<compile_context>
chip_gen: v6e
topology: v6e:2x2x1
jax: 0.10.0
libtpu: 0.0.40
codegen_flags: <defaults>
</compile_context>

<pallas_src>
import jax
import jax.numpy as jnp
from jax.experimental import pallas as pl
from jax.experimental.pallas import tpu as pltpu


def _eca_kernel(x_ref, w_ref, o_ref):
    """x_ref / o_ref: (TB, C, S) blocks.  w_ref: (K,) float32 conv taps in SMEM."""
    tb, c, s = x_ref.shape
    k = w_ref.shape[0]
    pad = (k - 1) // 2

    # --- AdaptiveAvgPool3d(1): per-(batch, channel) mean over the spatial lanes. ---
    # f32 accumulation inside the reduce; no full-tile f32 copy is materialized.
    m = jnp.sum(x_ref[...], axis=-1, dtype=jnp.float32) * (1.0 / s)        # (TB, C)

    # --- Conv1d(1, 1, k, padding=pad, bias=False) along the channel axis. ---
    # y[b, ch] = sum_j w[j] * m[b, ch + j - pad], zero outside [0, C).
    # K (roll + edge-mask + scalar FMA) steps on XLU/VPU; no MXU, no (C, C) band matrix.
    cidx = jax.lax.broadcasted_iota(jnp.int32, (tb, c), 1)
    y = jnp.zeros((tb, c), jnp.float32)
    for j in range(k):                                  # static unroll over the K taps
        d = j - pad
        if d == 0:
            tap = m
        else:
            rolled = pltpu.roll(m, shift=(-d) % c, axis=1)   # rolled[ch] = m[(ch + d) % C]
            valid = (cidx + d >= 0) & (cidx + d < c)         # zero padding at the edges
            tap = jnp.where(valid, rolled, 0.0)
        y = y + w_ref[j] * tap

    gate = jax.nn.sigmoid(y).astype(o_ref.dtype)             # (TB, C), native dtype

    # --- Gating: native-dtype multiply, gate broadcast over the spatial lanes. ---
    o_ref[...] = x_ref[...] * gate[:, :, None]


def _pick_batch_tile(B, bytes_per_batch):
    """Largest batch tile TB that divides B, fits the VMEM budget, and keeps grid >= 2."""
    # ~8 MiB blocks -> ~32 MiB with double-buffered in+out: safe on v7x (64 MiB VMEM),
    # comfortably inside v5e/v6e once the scoped limit is raised via vmem_limit_bytes.
    block_budget = 8 * 1024 * 1024
    cap = max(1, block_budget // max(1, bytes_per_batch))
    if B >= 2:
        cap = min(cap, max(1, B // 2))   # keep >= 2 grid steps so both v7x TCs get work
    cap = min(cap, B)
    # TODO(synk): for large prime-ish B with tiny per-batch blocks, switch to a padded /
    # remainder-aware index_map instead of forcing TB to divide B.
    return max(t for t in range(1, cap + 1) if B % t == 0)


def eca_3d(x, conv_w):
    """Pallas implementation of ECA_3D.forward.

    x:      (B, C, D, H, W)
    conv_w: (1, 1, K) PyTorch Conv1d weight (bias=False), K odd.
    """
    B, C, D, H, W = x.shape
    S = D * H * W
    K = conv_w.shape[-1]
    w = conv_w.reshape(K).astype(jnp.float32)

    # Free row-major reshape: spatial -> lane axis, channels -> sublanes.
    # TODO(synk): if S is not a multiple of 128 (e.g. 7*7*7 = 343), pad the spatial axis so
    # stores stay lane-dense (unmasked vst); demo S = 256 is already lane-dense.
    x3 = x.reshape(B, C, S)

    itemsize = x.dtype.itemsize
    TB = _pick_batch_tile(B, C * S * itemsize)
    grid = (B // TB,)

    cost = pl.CostEstimate(
        flops=2 * B * C * S,                                  # spatial reduce + gating mul
        transcendentals=B * C,                                # sigmoid
        bytes_accessed=2 * B * C * S * itemsize + K * 4,      # one read + one write of x
    )

    out = pl.pallas_call(
        _eca_kernel,
        grid=grid,
        in_specs=[
            pl.BlockSpec((TB, C, S), lambda b: (b, 0, 0)),         # TB batches per step
            pl.BlockSpec(memory_space=pltpu.MemorySpace.SMEM),     # K conv taps, scalar mem
        ],
        out_specs=pl.BlockSpec((TB, C, S), lambda b: (b, 0, 0)),
        out_shape=jax.ShapeDtypeStruct((B, C, S), x.dtype),
        input_output_aliases={0: 0},       # gated output over x's buffer when donated
        compiler_params=pltpu.CompilerParams(
            dimension_semantics=("parallel",),
            vmem_limit_bytes=48 * 1024 * 1024,
        ),
        cost_estimate=cost,
    )(x3, w)

    return out.reshape(B, C, D, H, W)

# TODO(synk): if C * D*H*W per batch ever exceeds VMEM, split into a two-pass kernel
# (spatially tiled pooling pass, then a gating pass); not needed at these sizes.


def eca_3d_reference(x, conv_w):
    """Pure-JAX mirror of the PyTorch forward (for verification)."""
    B, C, D, H, W = x.shape
    K = conv_w.shape[-1]
    pad = (K - 1) // 2
    w = conv_w.reshape(K)

    y = jnp.mean(x, axis=(2, 3, 4))                          # (B, C)  adaptive avg pool to 1
    yp = jnp.pad(y, ((0, 0), (pad, pad)))                    # zero padding along channels
    conv = sum(w[j] * yp[:, j:j + C] for j in range(K))      # (B, C)  Conv1d(1,1,K) over C
    gate = jax.nn.sigmoid(conv)
    return x * gate[:, :, None, None, None]


if __name__ == "__main__":
    key = jax.random.PRNGKey(0)
    B, C, D, H, W = 2, 32, 4, 8, 8          # S = D*H*W = 256 -> lane-dense
    k_size = 3
    k1, k2 = jax.random.split(key)

    x = jax.random.normal(k1, (B, C, D, H, W), jnp.float32)
    conv_w = 0.5 * jax.random.normal(k2, (1, 1, k_size), jnp.float32)   # Conv1d(1,1,3,bias=False)

    ref = eca_3d_reference(x, conv_w)

    out = jax.jit(eca_3d)(x, conv_w)
    out = jax.block_until_ready(out)

    assert out.shape == (B, C, D, H, W), out.shape
    max_err = float(jnp.max(jnp.abs(out - ref)))
    assert jnp.allclose(out, ref, rtol=1e-3, atol=1e-3), f"max abs err {max_err}"
    print("KERNEL_OK")
</pallas_src>

<mosaic_0001>
module attributes {stable_mosaic.version = 11 : i64} {
  func.func @_eca_kernel(%arg0: i32, %arg1: memref<1x32x256xf32, #tpu.memory_space<vmem>>, %arg2: memref<3xf32, #tpu.memory_space<smem>>, %arg3: memref<1x32x256xf32, #tpu.memory_space<vmem>>) attributes {dimension_semantics = [#tpu.dimension_semantics<parallel>], iteration_bounds = array<i64: 2>, scalar_prefetch = 0 : i64, scratch_operands = 0 : i64, tpu.core_type = #tpu.core_type<tc>, window_params = [{transform_indices = @transform_0, window_bounds = array<i64: 1, 32, 256>}, {transform_indices = @transform_1, window_bounds = array<i64: 3>}, {transform_indices = @transform_2, window_bounds = array<i64: 1, 32, 256>}]} {
    %c0 = arith.constant 0 : index
    %c0_0 = arith.constant 0 : index
    %c0_1 = arith.constant 0 : index
    %0 = vector.load %arg1[%c0, %c0_0, %c0_1] : memref<1x32x256xf32, #tpu.memory_space<vmem>>, vector<1x32x256xf32>
    %cst = arith.constant dense<0.000000e+00> : vector<1x32xf32>
    %1 = vector.multi_reduction <add>, %0, %cst [2] : vector<1x32x256xf32> to vector<1x32xf32>
    %cst_2 = arith.constant 3.906250e-03 : f32
    %2 = vector.broadcast %cst_2 : f32 to vector<1x32xf32>
    %3 = arith.mulf %1, %2 : vector<1x32xf32>
    %4 = tpu.iota {dimensions = array<i32: 1>} : vector<1x32xi32>
    %cst_3 = arith.constant 0.000000e+00 : f32
    %5 = vector.broadcast %cst_3 : f32 to vector<1x32xf32>
    %c1_i32 = arith.constant 1 : i32
    %6 = tpu.dynamic_rotate %3 by %c1_i32 dim 1 : vector<1x32xf32>, i32 -> vector<1x32xf32>
    %c-1_i32 = arith.constant -1 : i32
    %7 = vector.broadcast %c-1_i32 : i32 to vector<1x32xi32>
    %8 = arith.addi %4, %7 : vector<1x32xi32>
    %c0_i32 = arith.constant 0 : i32
    %9 = vector.broadcast %c0_i32 : i32 to vector<1x32xi32>
    %10 = arith.cmpi sge, %8, %9 : vector<1x32xi32>
    %c-1_i32_4 = arith.constant -1 : i32
    %11 = vector.broadcast %c-1_i32_4 : i32 to vector<1x32xi32>
    %12 = arith.addi %4, %11 : vector<1x32xi32>
    %c32_i32 = arith.constant 32 : i32
    %13 = vector.broadcast %c32_i32 : i32 to vector<1x32xi32>
    %14 = arith.cmpi slt, %12, %13 : vector<1x32xi32>
    %15 = arith.andi %10, %14 : vector<1x32xi1>
    %cst_5 = arith.constant 0.000000e+00 : f32
    %16 = vector.broadcast %cst_5 : f32 to vector<1x32xf32>
    %17 = arith.select %15, %6, %16 : vector<1x32xi1>, vector<1x32xf32>
    %c0_6 = arith.constant 0 : index
    %18 = memref.load %arg2[%c0_6] : memref<3xf32, #tpu.memory_space<smem>>
    %19 = vector.broadcast %18 : f32 to vector<1x32xf32>
    %20 = arith.mulf %19, %17 : vector<1x32xf32>
    %21 = arith.addf %5, %20 : vector<1x32xf32>
    %c1 = arith.constant 1 : index
    %22 = memref.load %arg2[%c1] : memref<3xf32, #tpu.memory_space<smem>>
    %23 = vector.broadcast %22 : f32 to vector<1x32xf32>
    %24 = arith.mulf %23, %3 : vector<1x32xf32>
    %25 = arith.addf %21, %24 : vector<1x32xf32>
    %c31_i32 = arith.constant 31 : i32
    %26 = tpu.dynamic_rotate %3 by %c31_i32 dim 1 : vector<1x32xf32>, i32 -> vector<1x32xf32>
    %c1_i32_7 = arith.constant 1 : i32
    %27 = vector.broadcast %c1_i32_7 : i32 to vector<1x32xi32>
    %28 = arith.addi %4, %27 : vector<1x32xi32>
    %c0_i32_8 = arith.constant 0 : i32
    %29 = vector.broadcast %c0_i32_8 : i32 to vector<1x32xi32>
    %30 = arith.cmpi sge, %28, %29 : vector<1x32xi32>
    %c1_i32_9 = arith.constant 1 : i32
    %31 = vector.broadcast %c1_i32_9 : i32 to vector<1x32xi32>
    %32 = arith.addi %4, %31 : vector<1x32xi32>
    %c32_i32_10 = arith.constant 32 : i32
    %33 = vector.broadcast %c32_i32_10 : i32 to vector<1x32xi32>
    %34 = arith.cmpi slt, %32, %33 : vector<1x32xi32>
    %35 = arith.andi %30, %34 : vector<1x32xi1>
    %cst_11 = arith.constant 0.000000e+00 : f32
    %36 = vector.broadcast %cst_11 : f32 to vector<1x32xf32>
    %37 = arith.select %35, %26, %36 : vector<1x32xi1>, vector<1x32xf32>
    %c2 = arith.constant 2 : index
    %38 = memref.load %arg2[%c2] : memref<3xf32, #tpu.memory_space<smem>>
    %39 = vector.broadcast %38 : f32 to vector<1x32xf32>
    %40 = arith.mulf %39, %37 : vector<1x32xf32>
    %41 = arith.addf %25, %40 : vector<1x32xf32>
    %42 = arith.negf %41 : vector<1x32xf32>
    %43 = math.exp %42 : vector<1x32xf32>
    %cst_12 = arith.constant 1.000000e+00 : f32
    %44 = vector.broadcast %cst_12 : f32 to vector<1x32xf32>
    %45 = arith.addf %44, %43 : vector<1x32xf32>
    %46 = arith.divf %44, %45 : vector<1x32xf32>
    %c0_13 = arith.constant 0 : index
    %c0_14 = arith.constant 0 : index
    %c0_15 = arith.constant 0 : index
    %47 = vector.load %arg1[%c0_13, %c0_14, %c0_15] : memref<1x32x256xf32, #tpu.memory_space<vmem>>, vector<1x32x256xf32>
    %48 = vector.shape_cast %46 : vector<1x32xf32> to vector<1x32x1xf32>
    %49 = vector.broadcast %48 : vector<1x32x1xf32> to vector<1x32x256xf32>
    %50 = arith.mulf %47, %49 : vector<1x32x256xf32>
    %c0_16 = arith.constant 0 : index
    %c0_17 = arith.constant 0 : index
    %c0_18 = arith.constant 0 : index
    %51 = vector.load %arg3[%c0_16, %c0_17, %c0_18] : memref<1x32x256xf32, #tpu.memory_space<vmem>>, vector<1x32x256xf32>
    tpu.vector_store %arg3[%c0_16, %c0_17, %c0_18], %50 {strides = array<i32>} : memref<1x32x256xf32, #tpu.memory_space<vmem>>, vector<1x32x256xf32>,
    return
  }
  func.func @transform_0(%arg0: i32) -> (i32, i32, i32) {
    %c0_i32 = arith.constant 0 : i32
    %c0_i32_0 = arith.constant 0 : i32
    %c0_i32_1 = arith.constant 0 : i32
    return %arg0, %c0_i32, %c0_i32_0 : i32, i32, i32
  }
  func.func @transform_1(%arg0: i32) -> i32 {
    %c0_i32 = arith.constant 0 : i32
    %c0_i32_0 = arith.constant 0 : i32
    return %c0_i32 : i32
  }
  func.func @transform_2(%arg0: i32) -> (i32, i32, i32) {
    %c0_i32 = arith.constant 0 : i32
    %c0_i32_0 = arith.constant 0 : i32
    %c0_i32_1 = arith.constant 0 : i32
    return %arg0, %c0_i32, %c0_i32_0 : i32, i32, i32
  }
}

</mosaic_0001>

<llo_original>
// kernel: eca_3d.1
$region0: #{eca_3d.1}
  #allocation0 [shape = 'u32[]', space=smem, size = 0x4, offset = 0x4, fixed_abs, tag = 'smem constant byte address 0x4 - core index']
  #allocation1 [shape = 'u32[144,128]{1,0:T(1,128)}', space=vmem, size = 0x12000, scoped, tag = 'internal scratch']
  %s0 = inlined_call_operand.vmem [shape: f32[2,32,256], index: 0, kind: input, shape index: {}, may-alias: {0,2}]
  %s1 = inlined_call_operand.vmem [shape: f32[3], index: 1, kind: input, shape index: {}]
  %s2 = inlined_call_operand.vmem [shape: f32[2,32,256], index: 2, kind: output, shape index: {}, may-alias: {0,2}]
  %s3 = sld [smem:[#allocation0]]
  $region45: #{eca_3d.1} parent=0
    _
  %s5 = ssub.s32 1, %s3
  %s6 = scalar_select 0, %s5, %s3
  $region1: #{eca_3d.1} parent=0
    #allocation2 [shape = 'u8[512]{0}', space=smem, size = 0x200, scoped, tag = 'input window, operand 1, single buffered']
    #allocation3 [shape = 's32[2]{0}', space=sflag, size = 0x8, scoped, tag = 'scoped memory for eca_3d.1']
    %7 = vsyncpa [#allocation3], 0
    loop: start=0, step=1, limit=4
    $region2: #{eca_3d.1} parent=1 // loop_pre_header
      _
    $region3: #{eca_3d.1} parent=1 // loop_header
      %s9 = sphi 0, %s13
      %p10 = scmp.ge.s32.totalorder %s9, 4
      %s19 = sphi 0, %s21
      %s22 = sphi 0, %s19
      %s23 = sphi 0, %s22
      %s39 = sphi 0, %s23
      %s43 = sphi 0, %s43
      %s45 = sphi 0, %s43
      %s46 = sphi 0, %s45
      %s60 = sphi 0, %s46
      %s66 = sphi 0, %s68
      %s69 = sphi 0, %s66
      %s70 = sphi 0, %s69
      %s86 = sphi 0, %s70
    $region4: #{eca_3d.1} parent=1 // loop_header_branch
      %12 = sbr.rel (%p10) target = $region8
    $region5: #{eca_3d.1} parent=1 // loop_body
      %s14 = ssub.s32 %s9, 1
      %s15 = ssub.s32 %s9, 2
      %s16 = sadd.s32 %s9, 1
      %s17 = ssub.s32 %s9, %s16
      %p18 = scmp.eq.s32.totalorder %s17, 0
      %s20 = sadd.s32 %s19, 1
      %s21 = scalar_select %p18, %s19, %s20
      %p24 = pneg %p18
      %p25 = scmp.eq.s32.totalorder %s9, 1
      %p26 = por %p24, %p25
      %p27 = scmp.ne.s32.totalorder %s19, %s22
      %p28 = scmp.eq.s32.totalorder %s9, 0
      %p29 = por %p27, %p28
      %p30 = scmp.ne.s32.totalorder %s19, %s22
      %p31 = scmp.eq.s32.totalorder %s14, 1
      %p32 = por %p30, %p31
      %p33 = scmp.ne.s32.totalorder %s22, %s23
      %p34 = scmp.eq.s32.totalorder %s14, 0
      %p35 = por %p33, %p34
      %p36 = scmp.ne.s32.totalorder %s22, %s23
      %p37 = scmp.eq.s32.totalorder %s15, 1
      %p38 = por %p36, %p37
      %p40 = scmp.ne.s32.totalorder %s23, %s39
      %p41 = scmp.eq.s32.totalorder %s15, 0
      %p42 = por %p40, %p41
      %s44 = sadd.s32 %s43, 1
      %p47 = scmp.eq.s32.totalorder %s9, 1
      %p48 = scmp.ne.s32.totalorder %s43, %s45
      %p49 = scmp.eq.s32.totalorder %s9, 0
      %p50 = por %p48, %p49
      %p51 = scmp.ne.s32.totalorder %s43, %s45
      %p52 = scmp.eq.s32.totalorder %s14, 1
      %p53 = por %p51, %p52
      %p54 = scmp.ne.s32.totalorder %s45, %s46
      %p55 = scmp.eq.s32.totalorder %s14, 0
      %p56 = por %p54, %p55
      %p57 = scmp.ne.s32.totalorder %s45, %s46
      %p58 = scmp.eq.s32.totalorder %s15, 1
      %p59 = por %p57, %p58
      %p61 = scmp.ne.s32.totalorder %s46, %s60
      %p62 = scmp.eq.s32.totalorder %s15, 0
      %p63 = por %p61, %p62
      %s64 = ssub.s32 %s9, %s16
      %p65 = scmp.eq.s32.totalorder %s64, 0
      %s67 = sadd.s32 %s66, 1
      %s68 = scalar_select %p65, %s66, %s67
      %p71 = pneg %p65
      %p72 = scmp.eq.s32.totalorder %s9, 1
      %p73 = por %p71, %p72
      %p74 = scmp.ne.s32.totalorder %s66, %s69
      %p75 = scmp.eq.s32.totalorder %s9, 0
      %p76 = por %p74, %p75
      %p77 = scmp.ne.s32.totalorder %s66, %s69
      %p78 = scmp.eq.s32.totalorder %s14, 1
      %p79 = por %p77, %p78
      %p80 = scmp.ne.s32.totalorder %s69, %s70
      %p81 = scmp.eq.s32.totalorder %s14, 0
      %p82 = por %p80, %p81
      %p83 = scmp.ne.s32.totalorder %s69, %s70
      %p84 = scmp.eq.s32.totalorder %s15, 1
      %p85 = por %p83, %p84
      %p87 = scmp.ne.s32.totalorder %s70, %s86
      %p88 = scmp.eq.s32.totalorder %s15, 0
      %p89 = por %p87, %p88
      %p90 = scmp.le.s32.totalorder 1, %s9
      %p91 = scmp.lt.s32.totalorder %s9, 3
      %p92 = pnand %p90, %p91
      %p93 = pneg %p92
      // Predicated region
      $region9: #{eca_3d.1} parent=5 // pred_check
        _
      $region10: #{eca_3d.1} parent=5 // pred_check_branch
        %95 = sbr.rel (%p92) target = $region12
      $region11: #{eca_3d.1} parent=5 // pred_region
        %s96 = ssub.s32 %s9, 1
        // Predicated region
        $region13: #{eca_3d.1} parent=11 // pred_check
          %p97 = pneg %p56
        $region14: #{eca_3d.1} parent=11 // pred_check_branch
          %99 = sbr.rel (%p97) target = $region16
        $region15: #{eca_3d.1} parent=11 // pred_region
          %s101 = ssub.s32 16, 16
          %102 = vsyncadd [#allocation3], %s101
          %s104 = sshll.u32 %s1, 4
          %s105 = int_to_ptr.vmem [resolvable:$true] %s104
          %107 = dma.vmem_to_smem %s105, 16, [#allocation2], [#allocation3]
        $region16: #{eca_3d.1} parent=11 // pred_fallthru
          _
      $region12: #{eca_3d.1} parent=5 // pred_fallthru
        _
      %p108 = scmp.lt.s32.totalorder %s9, 2
      // Predicated region
      $region17: #{eca_3d.1} parent=5 // pred_check
        %p109 = pneg %p108
      $region18: #{eca_3d.1} parent=5 // pred_check_branch
        %111 = sbr.rel (%p109) target = $region20
      $region19: #{eca_3d.1} parent=5 // pred_region
        // Predicated region
        $region21: #{eca_3d.1} parent=19 // pred_check
          %p112 = pneg %p29
        $region22: #{eca_3d.1} parent=19 // pred_check_branch
          %114 = sbr.rel (%p112) target = $region24
        $region23: #{eca_3d.1} parent=19 // pred_region
          %p115 = scmp.lt.s32.totalorder %s9, 1
          %s116 = scalar_select %p115, %s9, 1
          %s117 = smul.addr %s116, 8
          %s118 = smul.addr %s117, 8
          %s119 = scalar_lea.vmem %s0, %s118
        $region24: #{eca_3d.1} parent=19 // pred_fallthru
          _
      $region20: #{eca_3d.1} parent=5 // pred_fallthru
        _
      %p120 = scmp.le.s32.totalorder 1, %s9
      %p121 = scmp.lt.s32.totalorder %s9, 3
      %p122 = pnand %p120, %p121
      %p123 = pneg %p122
      // Predicated region
      $region25: #{eca_3d.1} parent=5 // pred_check
        _
      $region26: #{eca_3d.1} parent=5 // pred_check_branch
        %125 = sbr.rel (%p122) target = $region28
      $region27: #{eca_3d.1} parent=5 // pred_region
        %s126 = ssub.s32 %s9, 1
        // Predicated region
        $region29: #{eca_3d.1} parent=27 // pred_check
          %p127 = pneg %p56
        $region30: #{eca_3d.1} parent=27 // pred_check_branch
          %129 = sbr.rel (%p127) target = $region32
        $region31: #{eca_3d.1} parent=27 // pred_region
          %130 = dma.done [#allocation3], 16
        $region32: #{eca_3d.1} parent=27 // pred_fallthru
          _
        %131 = sfence
        %p132 = scmp.lt.s32.totalorder %s14, 1
        %s133 = scalar_select %p132, %s14, 1
        %s134 = smul.addr %s133, 8
        %s135 = smul.addr %s134, 8
        %s136 = scalar_lea.vmem %s0, %s135
        %p137 = pneg %p35
        %p138 = pneg %p32
        %p139 = pneg %p56
        %p140 = pneg %p53
        %p141 = pneg %p82
        %p142 = pneg %p79
        %p143 = scmp.lt.s32.totalorder %s14, 1
        %s144 = scalar_select %p143, %s14, 1
        %s145 = smul.addr %s144, 8
        %s146 = smul.addr %s145, 8
        %s147 = scalar_lea.vmem %s2, %s146
        %p148 = scmp.lt.s32.totalorder %s14, 1
        %s149 = scalar_select %p148, %s14, 1
        %s150 = smul.addr %s149, 8
        %s151 = smul.addr %s150, 8
        %s152 = scalar_lea.vmem %s0, %s151
        %p153 = scmp.lt.s32.totalorder %s14, 1
        %s154 = scalar_select %p153, %s14, 1
        %s155 = smul.addr %s154, 8
        %s156 = smul.addr %s155, 8
        %s157 = scalar_lea.vmem %s2, %s156
        %v158 = vld [vmem:[%s152] sm:$0xff]
        %v159 = vld [vmem:[%s152 + $0x8] sm:$0xff]
        %v160 = vld [vmem:[%s152 + $0x10] sm:$0xff]
        %v161 = vld [vmem:[%s152 + $0x18] sm:$0xff]
        %v162 = vld [vmem:[%s152 + $0x20] sm:$0xff]
        %v163 = vld [vmem:[%s152 + $0x28] sm:$0xff]
        %v164 = vld [vmem:[%s152 + $0x30] sm:$0xff]
        %v165 = vld [vmem:[%s152 + $0x38] sm:$0xff]
        %v166 = vadd.f32 %v158, %v159
        %167 = vadd.xlane.f32.xlu0 %v166
        %v168 = vpop.xlane.xlu0 %167
        %v169 = vadd.f32 %v160, %v161
        %170 = vadd.xlane.f32.xlu0 %v169
        %v171 = vpop.xlane.xlu0 %170
        %v172 = vadd.f32 %v162, %v163
        %173 = vadd.xlane.f32.xlu0 %v172
        %v174 = vpop.xlane.xlu0 %173
        %v175 = vadd.f32 %v164, %v165
        %176 = vadd.xlane.f32.xlu0 %v175
        %v177 = vpop.xlane.xlu0 %176
        %v178 = vmul.f32 %v168, 0.00390625
        %v179 = vmul.f32 %v171, 0.00390625
        %v180 = vmul.f32 %v174, 0.00390625
        %v181 = vmul.f32 %v177, 0.00390625
        %v182 = vlaneseq
        %v183 = vand.u32 %v182, 127
        %v188 = vlaneseq
        %v189 = vshrl.u32 %v188, 7
        %v190 = vsub.s32 %v183, %v189
        %v191 = vrot.slane %v178, %v190
        %v192 = vadd.s32 %v183, 4294967288
        %v193 = vlaneseq
        %v194 = vshrl.u32 %v193, 7
        %v195 = vsub.s32 %v192, %v194
        %v196 = vrot.slane %v179, %v195
        %vm197 = vcmask 130112
        %v198 = vsel %vm197, %v196, %v191
        %v199 = vadd.s32 %v183, 4294967280
        %v200 = vlaneseq
        %v201 = vshrl.u32 %v200, 7
        %v202 = vsub.s32 %v199, %v201
        %v203 = vrot.slane %v180, %v202
        %vm204 = vcmask 195712
        %v205 = vsel %vm204, %v203, %v198
        %v206 = vadd.s32 %v183, 4294967272
        %v207 = vlaneseq
        %v208 = vshrl.u32 %v207, 7
        %v209 = vsub.s32 %v206, %v208
        %v210 = vrot.slane %v181, %v209
        %vm211 = vcmask 261312
        %v212 = vsel %vm211, %v210, %v205
        %vm214 = vcmask 1047808
        %215 = vrot.lane.b32.xlu0 %v212, 32
        %v216 = vpop.permute.xlu0 %215
        %v217 = vsel %vm214, %v216, %v212
        %218 = vrot.lane.b32.xlu0 %v217, 32
        %v219 = vpop.permute.xlu0 %218
        %v220 = vsel %vm214, %v219, %v212
        %v221 = vadd.s32 %v183, 4294967295
        %vm222 = vcmp.ge.s32.totalorder %v221, 0
        %vm223 = vcmp.lt.s32.totalorder %v221, 32
        %vm224 = vmand %vm222, %vm223
        %226 = vrot.lane.b32.xlu0 %v220, 97
        %v227 = vpop.permute.xlu0 %226
        %v229 = vsel %vm224, %v227, 0.0
        %s230 = sld [smem:[#allocation2]]
        %v231 = vstv %s230
        %v232 = vmul.f32 %v231, %v229
        %v233 = vadd.f32 %v232, 0.0
        %s234 = sld [smem:[#allocation2 + $0x1]]
        %v235 = vstv %s234
        %v236 = vmul.f32 %v235, %v178
        %v237 = vmul.f32 %v235, %v179
        %v238 = vmul.f32 %v235, %v180
        %v239 = vmul.f32 %v235, %v181
        %v244 = vlaneseq
        %v245 = vshrl.u32 %v244, 7
        %v246 = vsub.s32 %v183, %v245
        %v247 = vrot.slane %v236, %v246
        %v248 = vlaneseq
        %v249 = vshrl.u32 %v248, 7
        %v250 = vsub.s32 %v192, %v249
        %v251 = vrot.slane %v237, %v250
        %v252 = vsel %vm197, %v251, %v247
        %v253 = vlaneseq
        %v254 = vshrl.u32 %v253, 7
        %v255 = vsub.s32 %v199, %v254
        %v256 = vrot.slane %v238, %v255
        %v257 = vsel %vm204, %v256, %v252
        %v258 = vlaneseq
        %v259 = vshrl.u32 %v258, 7
        %v260 = vsub.s32 %v206, %v259
        %v261 = vrot.slane %v239, %v260
        %v262 = vsel %vm211, %v261, %v257
        %v264 = vadd.f32 %v233, %v262
        %v265 = vadd.s32 %v183, 1
        %vm266 = vcmp.ge.s32.totalorder %v265, 0
        %vm267 = vcmp.lt.s32.totalorder %v265, 32
        %vm268 = vmand %vm266, %vm267
        %269 = vrot.lane.b32.xlu0 %v220, 127
        %v270 = vpop.permute.xlu0 %269
        %v272 = vsel %vm268, %v270, 0.0
        %s273 = sld [smem:[#allocation2 + $0x2]]
        %v274 = vstv %s273
        %v275 = vmul.f32 %v274, %v272
        %v276 = vadd.f32 %v264, %v275
        %v277 = vxor.u32 %v276, 2147483648
        %v278 = vmul.f32 %v277, 1.442695
        %v279 = vpow.pop %v278
        %v280 = vadd.f32 %v279, 1.0
        %v281 = vrcp.pop %v280
        %v282 = vmul.f32 1.0, %v281
        %v283 = vlaneseq
        %v284 = vshrl.u32 %v283, 7
        %v285 = vsub.s32 0, %v284
        %v286 = vrot.slane %v282, %v285
        %288 = vbcast.lane.b32.xlu0 %v286, 256
        %v289 = vpop.permute.xlu0 %288
        %s291 = sor.u32 256, 8
        %292 = vbcast.lane.b32.xlu0 %v286, %s291
        %v293 = vpop.permute.xlu0 %292
        %s295 = sor.u32 256, 16
        %296 = vbcast.lane.b32.xlu0 %v286, %s295
        %v297 = vpop.permute.xlu0 %296
        %s299 = sor.u32 256, 24
        %300 = vbcast.lane.b32.xlu0 %v286, %s299
        %v301 = vpop.permute.xlu0 %300
        %v302 = vmul.f32 %v158, %v289
        %v303 = vmul.f32 %v159, %v289
        %v304 = vmul.f32 %v160, %v293
        %v305 = vmul.f32 %v161, %v293
        %v306 = vmul.f32 %v162, %v297
        %v307 = vmul.f32 %v163, %v297
        %v308 = vmul.f32 %v164, %v301
        %v309 = vmul.f32 %v165, %v301
        %310 = vst [vmem:[%s157] sm:$0xff] %v302
        %311 = vst [vmem:[%s157 + $0x8] sm:$0xff] %v303
        %312 = vst [vmem:[%s157 + $0x10] sm:$0xff] %v304
        %313 = vst [vmem:[%s157 + $0x18] sm:$0xff] %v305
        %314 = vst [vmem:[%s157 + $0x20] sm:$0xff] %v306
        %315 = vst [vmem:[%s157 + $0x28] sm:$0xff] %v307
        %316 = vst [vmem:[%s157 + $0x30] sm:$0xff] %v308
        %317 = vst [vmem:[%s157 + $0x38] sm:$0xff] %v309
        %p318 = scmp.lt.s32.totalorder %s14, 1
        %s319 = scalar_select %p318, %s14, 1
        %s320 = smul.addr %s319, 8
        %s321 = smul.addr %s320, 8
        %s322 = scalar_lea.vmem %s2, %s321
        // Predicated region
        $region33: #{eca_3d.1} parent=27 // pred_check
          %p323 = pneg %p79
        $region34: #{eca_3d.1} parent=27 // pred_check_branch
          %325 = sbr.rel (%p323) target = $region36
        $region35: #{eca_3d.1} parent=27 // pred_region
          _
        $region36: #{eca_3d.1} parent=27 // pred_fallthru
          _
      $region28: #{eca_3d.1} parent=5 // pred_fallthru
        _
      %p326 = scmp.le.s32.totalorder 2, %s9
      // Predicated region
      $region37: #{eca_3d.1} parent=5 // pred_check
        %p327 = pneg %p326
      $region38: #{eca_3d.1} parent=5 // pred_check_branch
        %329 = sbr.rel (%p327) target = $region40
      $region39: #{eca_3d.1} parent=5 // pred_region
        %s330 = ssub.s32 %s9, 2
        // Predicated region
        $region41: #{eca_3d.1} parent=39 // pred_check
          %p331 = pneg %p85
        $region42: #{eca_3d.1} parent=39 // pred_check_branch
          %333 = sbr.rel (%p331) target = $region44
        $region43: #{eca_3d.1} parent=39 // pred_region
          %p334 = scmp.lt.s32.totalorder %s15, 1
          %s335 = scalar_select %p334, %s15, 1
          %s336 = smul.addr %s335, 8
          %s337 = smul.addr %s336, 8
          %s338 = scalar_lea.vmem %s2, %s337
        $region44: #{eca_3d.1} parent=39 // pred_fallthru
          _
      $region40: #{eca_3d.1} parent=5 // pred_fallthru
        _
    $region6: #{eca_3d.1} parent=1 // loop_footer
      %s13 = sadd.s32 1, %s9
    $region7: #{eca_3d.1} parent=1 // loop_footer_branch
      %8 = sbr.rel target = $region3
    $region8: #{eca_3d.1} parent=1 // loop_exit
      _
    %339 = vsyncpa [#allocation3], 1
    %s340 = scalar_lea.sflag [#allocation3], 1
    %341 = vsyncpa %s340, 1

</llo_original>
